<compile_context>
chip_gen: v7x
topology: tpu7x:2x2x1
jax: 0.10.0
libtpu: 0.0.40
codegen_flags: <defaults>
</compile_context>

<pallas_src>
import functools

import jax
import jax.numpy as jnp
from jax.experimental import pallas as pl
from jax.experimental.pallas import tpu as pltpu
import numpy as np


def _mha_kernel(v_ref, wc_ref, bc_ref, emat_ref, out_ref, attn_ref,
                *, b_blk, seq_len, n_head):
    # v_ref:    (B_blk, S, D_in)   this block's values
    # wc_ref:   (D_in, H)          folded score matrix (Wk, Q, 1/temp folded in wrapper)
    # bc_ref:   (1, H)             folded score bias
    # emat_ref: (H, D_in)          head -> feature-slice expansion (0/1)
    # out_ref:  (B_blk, D_in)      output, flat per-head slices along lanes
    # attn_ref: (B_blk, S, H)      attention probabilities, batch-major
    B, S, H = b_blk, seq_len, n_head
    v3 = v_ref[...]                                     # (B, S, D_in)
    d_in = v3.shape[-1]
    v2 = v3.reshape(B * S, d_in)                        # leading-dim merge (free)

    # (1) folded scores for all heads at once:
    #     ((v @ Wk^T + bk) @ Q_blockdiag) / temp  ==  v @ Wc + bc
    s2 = jnp.dot(v2, wc_ref[...],
                 preferred_element_type=jnp.float32) + bc_ref[...]   # (B*S, H)

    # (2) softmax over the sequence axis, per (batch, head), on the VPU.
    s3 = s2.reshape(B, S, H)                            # leading-dim split (free)
    m = jnp.max(s3, axis=1, keepdims=True)              # (B, 1, H)
    e = jnp.exp(s3 - m)
    p3 = e / jnp.sum(e, axis=1, keepdims=True)          # (B, S, H)
    attn_ref[...] = p3                                  # single contiguous store

    # (3) attend: expand head probs across that head's d_v feature slice,
    #     weight v on the VPU, segment-sum over seq with a sublane reduction
    #     (no MXU, no quadratic Seg matrix).
    p2 = p3.reshape(B * S, H)                           # leading-dim merge (free)
    p_exp = jnp.dot(p2, emat_ref[...],
                    preferred_element_type=jnp.float32)  # (B*S, D_in)
    weighted = p_exp * v2                                # VPU elementwise
    out_ref[...] = jnp.sum(weighted.reshape(B, S, d_in), axis=1)   # (B_blk, D_in)


# Conservative per-block VMEM budget: double-buffered v input + outputs +
# intermediates comfortably inside v5e's 16 MiB scoped default and v7x's
# 64 MiB physical VMEM.
_VMEM_BUDGET_BYTES = 8 << 20


def _choose_batch_block(sz_b, seq_len, d_in, requested=None):
    """Pick the per-grid-step batch block.

    Fewest grid steps wins (per-step fixed cost ~0.35us; v5e/v6e have a single
    TensorCore so splitting only serializes).  A 2-way "parallel" split is used
    only when each half still fills the MXU M dim (>= 256 rows) -- the case
    where v7x's second TensorCore pays and the per-step overhead is already
    amortized.  Blocks always fit the conservative VMEM budget above.
    """
    def ok(b):
        return sz_b % b == 0 and (b % 8 == 0 or b == sz_b)

    def fits(b):
        # ~4x the v block: double-buffered input + outputs + intermediates.
        return 4 * b * seq_len * d_in * 4 <= _VMEM_BUDGET_BYTES

    if requested is not None:
        if not ok(requested):
            raise ValueError("batch_block must divide sz_b and be a multiple "
                             "of 8 (or equal sz_b)")
        return requested

    half = sz_b // 2
    if sz_b % 2 == 0 and ok(half) and half * seq_len >= 256 and fits(half):
        return half                      # even 2-way split for 2-TC chips (v7x)

    for b in sorted({d for d in range(1, sz_b + 1) if ok(d)}, reverse=True):
        if fits(b):
            return b                     # fewest grid steps that fit VMEM
    return min(8, sz_b)


def multi_head_attention(q_in, k_in, v_in, Q_param, Wk, bk, *, n_head, d_k,
                         batch_block=None):
    """Pallas implementation of MultiHeadAttention.forward.

    q_in/k_in/v_in: (sz_b, seq_len, d_in) float32. Only v_in's values and the
    batch size matter (matching the PyTorch module's semantics).
    Returns (output, attn): (n_head, sz_b, d_in//n_head), (n_head, sz_b, seq_len).
    """
    sz_b, seq_len, d_in = q_in.shape
    d_v = d_in // n_head
    inv_temp = float(1.0 / np.power(d_k, 0.5))
    b_blk = _choose_batch_block(sz_b, seq_len, d_in, batch_block)
    n_blocks = sz_b // b_blk

    # --- hoisted, per-call parameter prep (tiny, parameter-only ops) ---
    Q_f = jnp.asarray(Q_param, jnp.float32)                       # (H, Dk)
    Wk_f = jnp.asarray(Wk, jnp.float32).reshape(n_head, d_k, d_in)
    bk_f = jnp.asarray(bk, jnp.float32).reshape(n_head, d_k)
    # Folded score matrix / bias (fc1_k, per-head Q dot, and 1/temp all folded):
    #   Wc[:, h] = Wk[h]^T @ Q[h] / temp     bc[h] = bk[h] . Q[h] / temp
    wc = jnp.einsum('hkd,hk->dh', Wk_f, Q_f) * inv_temp           # (D_in, H)
    bc = (jnp.einsum('hk,hk->h', bk_f, Q_f) * inv_temp).reshape(1, n_head)
    # head -> feature-slice expansion: e_mat[h, h*d_v + dv] = 1
    e_mat = jnp.repeat(jnp.eye(n_head, dtype=jnp.float32), d_v, axis=1)  # (H, D_in)

    kernel = functools.partial(
        _mha_kernel, b_blk=b_blk, seq_len=seq_len, n_head=n_head)

    out_flat, attn_bsh = pl.pallas_call(
        kernel,
        out_shape=(
            jax.ShapeDtypeStruct((sz_b, d_in), jnp.float32),
            jax.ShapeDtypeStruct((sz_b, seq_len, n_head), jnp.float32),
        ),
        grid_spec=pltpu.PrefetchScalarGridSpec(
            num_scalar_prefetch=0,
            grid=(n_blocks,),
            in_specs=[
                pl.BlockSpec((b_blk, seq_len, d_in), lambda b: (b, 0, 0)),
                pl.BlockSpec((d_in, n_head), lambda b: (0, 0)),
                pl.BlockSpec((1, n_head), lambda b: (0, 0)),
                pl.BlockSpec((n_head, d_in), lambda b: (0, 0)),
            ],
            out_specs=[
                pl.BlockSpec((b_blk, d_in), lambda b: (b, 0)),
                pl.BlockSpec((b_blk, seq_len, n_head), lambda b: (b, 0, 0)),
            ],
        ),
        compiler_params=pltpu.CompilerParams(
            dimension_semantics=("parallel",)),
    )(v_in, wc, bc, e_mat)

    # Tiny metadata-size rearrangement to PyTorch's (n_head, sz_b, ...) order.
    output = out_flat.reshape(sz_b, n_head, d_v).transpose(1, 0, 2)
    attn = attn_bsh.transpose(2, 0, 1)
    return output, attn


def _reference(q_in, k_in, v_in, Q_param, Wk, bk, *, n_head, d_k):
    """Pure-JAX mirror of the PyTorch forward (for correctness checking)."""
    sz_b, seq_len, d_in = q_in.shape
    d_v = d_in // n_head
    temperature = float(np.power(d_k, 0.5))

    k = jnp.einsum('bsd,od->bso', v_in, Wk) + jnp.reshape(bk, (-1,))  # (B,S,H*Dk)
    k = k.reshape(sz_b, seq_len, n_head, d_k)
    k = jnp.transpose(k, (2, 0, 1, 3)).reshape(-1, seq_len, d_k)      # (H*B,S,Dk)
    qr = jnp.repeat(Q_param[:, None, :], sz_b, axis=1).reshape(-1, d_k)
    v_split = jnp.stack(jnp.split(v_in, n_head, axis=-1)).reshape(
        n_head * sz_b, seq_len, d_v)                                  # (H*B,S,Dv)

    attn = jnp.einsum('nd,nsd->ns', qr, k) / temperature              # (H*B,S)
    attn = jax.nn.softmax(attn, axis=-1)
    out = jnp.einsum('ns,nsd->nd', attn, v_split)                     # (H*B,Dv)
    return (out.reshape(n_head, sz_b, d_v),
            attn.reshape(n_head, sz_b, seq_len))


if __name__ == "__main__":
    # Small shapes consistent with the module.  At this size the chooser picks
    # a single grid step (M = sz_b*seq_len = 128 rows into every matmul).
    n_head, d_k, d_in = 4, 16, 32
    sz_b, seq_len = 16, 8
    d_v = d_in // n_head

    key = jax.random.PRNGKey(0)
    kq, kk, kv, kQ, kW, kb = jax.random.split(key, 6)

    q_in = jax.random.normal(kq, (sz_b, seq_len, d_in), dtype=jnp.float32)
    k_in = jax.random.normal(kk, (sz_b, seq_len, d_in), dtype=jnp.float32)
    v_in = jax.random.normal(kv, (sz_b, seq_len, d_in), dtype=jnp.float32)

    # Parameter init mirroring the module's __init__ shapes:
    #   Q:        (n_head, d_k),       normal std sqrt(2/d_k)
    #   fc1_k.W:  (n_head*d_k, d_in),  normal std sqrt(2/d_k)
    #   fc1_k.b:  (n_head*d_k,),       small uniform (PyTorch Linear default style)
    std = float(np.sqrt(2.0 / d_k))
    Q_param = std * jax.random.normal(kQ, (n_head, d_k), dtype=jnp.float32)
    Wk = std * jax.random.normal(kW, (n_head * d_k, d_in), dtype=jnp.float32)
    bound = 1.0 / float(np.sqrt(d_in))
    bk = jax.random.uniform(kb, (n_head * d_k,), dtype=jnp.float32,
                            minval=-bound, maxval=bound)

    output, attn = multi_head_attention(
        q_in, k_in, v_in, Q_param, Wk, bk, n_head=n_head, d_k=d_k)
    output, attn = jax.block_until_ready((output, attn))

    ref_out, ref_attn = _reference(
        q_in, k_in, v_in, Q_param, Wk, bk, n_head=n_head, d_k=d_k)

    assert output.shape == (n_head, sz_b, d_v)
    assert attn.shape == (n_head, sz_b, seq_len)
    np.testing.assert_allclose(np.asarray(output), np.asarray(ref_out),
                               rtol=1e-5, atol=1e-5)
    np.testing.assert_allclose(np.asarray(attn), np.asarray(ref_attn),
                               rtol=1e-5, atol=1e-5)
    print("KERNEL_OK")
</pallas_src>

<mosaic_0001>
module attributes {stable_mosaic.version = 11 : i64} {
  func.func @_mha_kernel(%arg0: i32, %arg1: memref<16x8x32xf32, #tpu.memory_space<vmem>>, %arg2: memref<32x4xf32, #tpu.memory_space<vmem>>, %arg3: memref<1x4xf32, #tpu.memory_space<vmem>>, %arg4: memref<4x32xf32, #tpu.memory_space<vmem>>, %arg5: memref<16x32xf32, #tpu.memory_space<vmem>>, %arg6: memref<16x8x4xf32, #tpu.memory_space<vmem>>) attributes {dimension_semantics = [#tpu.dimension_semantics<parallel>], iteration_bounds = array<i64: 1>, scalar_prefetch = 0 : i64, scratch_operands = 0 : i64, tpu.core_type = #tpu.core_type<tc>, window_params = [{transform_indices = @transform_0, window_bounds = array<i64: 16, 8, 32>}, {pipeline_mode = #tpu.pipeline_mode<synchronous>, transform_indices = @transform_1, window_bounds = array<i64: 32, 4>}, {pipeline_mode = #tpu.pipeline_mode<synchronous>, transform_indices = @transform_2, window_bounds = array<i64: 1, 4>}, {pipeline_mode = #tpu.pipeline_mode<synchronous>, transform_indices = @transform_3, window_bounds = array<i64: 4, 32>}, {transform_indices = @transform_4, window_bounds = array<i64: 16, 32>}, {transform_indices = @transform_5, window_bounds = array<i64: 16, 8, 4>}]} {
    %c0 = arith.constant 0 : index
    %c0_0 = arith.constant 0 : index
    %c0_1 = arith.constant 0 : index
    %0 = vector.load %arg1[%c0, %c0_0, %c0_1] : memref<16x8x32xf32, #tpu.memory_space<vmem>>, vector<16x8x32xf32>
    %1 = vector.shape_cast %0 : vector<16x8x32xf32> to vector<128x32xf32>
    %c0_2 = arith.constant 0 : index
    %c0_3 = arith.constant 0 : index
    %2 = vector.load %arg2[%c0_2, %c0_3] : memref<32x4xf32, #tpu.memory_space<vmem>>, vector<32x4xf32>
    %cst = arith.constant dense<0.000000e+00> : vector<128x4xf32>
    %3 = tpu.matmul %1, %2, %cst {dimension_numbers = #tpu.dot_dimension_numbers<[1], [0], [0], [1], [0, 0, 1, 1], [], []>} : vector<128x32xf32>, vector<32x4xf32>, vector<128x4xf32> -> vector<128x4xf32>
    %c0_4 = arith.constant 0 : index
    %c0_5 = arith.constant 0 : index
    %4 = vector.load %arg3[%c0_4, %c0_5] : memref<1x4xf32, #tpu.memory_space<vmem>>, vector<1x4xf32>
    %5 = vector.broadcast %4 : vector<1x4xf32> to vector<128x4xf32>
    %6 = arith.addf %3, %5 : vector<128x4xf32>
    %7 = vector.shape_cast %6 : vector<128x4xf32> to vector<16x8x4xf32>
    %cst_6 = arith.constant dense<0xFF800000> : vector<16x4xf32>
    %8 = vector.multi_reduction <maximumf>, %7, %cst_6 [1] : vector<16x8x4xf32> to vector<16x4xf32>
    %9 = vector.shape_cast %8 : vector<16x4xf32> to vector<16x1x4xf32>
    %10 = vector.broadcast %9 : vector<16x1x4xf32> to vector<16x8x4xf32>
    %11 = arith.subf %7, %10 : vector<16x8x4xf32>
    %12 = math.exp %11 : vector<16x8x4xf32>
    %cst_7 = arith.constant dense<0.000000e+00> : vector<16x4xf32>
    %13 = vector.multi_reduction <add>, %12, %cst_7 [1] : vector<16x8x4xf32> to vector<16x4xf32>
    %14 = vector.shape_cast %13 : vector<16x4xf32> to vector<16x1x4xf32>
    %15 = vector.broadcast %14 : vector<16x1x4xf32> to vector<16x8x4xf32>
    %16 = arith.divf %12, %15 : vector<16x8x4xf32>
    %c0_8 = arith.constant 0 : index
    %c0_9 = arith.constant 0 : index
    %c0_10 = arith.constant 0 : index
    %17 = vector.load %arg6[%c0_8, %c0_9, %c0_10] : memref<16x8x4xf32, #tpu.memory_space<vmem>>, vector<16x8x4xf32>
    tpu.vector_store %arg6[%c0_8, %c0_9, %c0_10], %16 {strides = array<i32>} : memref<16x8x4xf32, #tpu.memory_space<vmem>>, vector<16x8x4xf32>,
    %18 = vector.shape_cast %16 : vector<16x8x4xf32> to vector<128x4xf32>
    %c0_11 = arith.constant 0 : index
    %c0_12 = arith.constant 0 : index
    %19 = vector.load %arg4[%c0_11, %c0_12] : memref<4x32xf32, #tpu.memory_space<vmem>>, vector<4x32xf32>
    %cst_13 = arith.constant dense<0.000000e+00> : vector<128x32xf32>
    %20 = tpu.matmul %18, %19, %cst_13 {dimension_numbers = #tpu.dot_dimension_numbers<[1], [0], [0], [1], [0, 0, 1, 1], [], []>} : vector<128x4xf32>, vector<4x32xf32>, vector<128x32xf32> -> vector<128x32xf32>
    %21 = arith.mulf %20, %1 : vector<128x32xf32>
    %22 = vector.shape_cast %21 : vector<128x32xf32> to vector<16x8x32xf32>
    %cst_14 = arith.constant dense<0.000000e+00> : vector<16x32xf32>
    %23 = vector.multi_reduction <add>, %22, %cst_14 [1] : vector<16x8x32xf32> to vector<16x32xf32>
    %c0_15 = arith.constant 0 : index
    %c0_16 = arith.constant 0 : index
    %24 = vector.load %arg5[%c0_15, %c0_16] : memref<16x32xf32, #tpu.memory_space<vmem>>, vector<16x32xf32>
    tpu.vector_store %arg5[%c0_15, %c0_16], %23 {strides = array<i32>} : memref<16x32xf32, #tpu.memory_space<vmem>>, vector<16x32xf32>,
    return
  }
  func.func @transform_0(%arg0: i32) -> (i32, i32, i32) {
    %c0_i32 = arith.constant 0 : i32
    %c0_i32_0 = arith.constant 0 : i32
    %c0_i32_1 = arith.constant 0 : i32
    return %arg0, %c0_i32, %c0_i32_0 : i32, i32, i32
  }
  func.func @transform_1(%arg0: i32) -> (i32, i32) {
    %c0_i32 = arith.constant 0 : i32
    %c0_i32_0 = arith.constant 0 : i32
    %c0_i32_1 = arith.constant 0 : i32
    return %c0_i32, %c0_i32_0 : i32, i32
  }
  func.func @transform_2(%arg0: i32) -> (i32, i32) {
    %c0_i32 = arith.constant 0 : i32
    %c0_i32_0 = arith.constant 0 : i32
    %c0_i32_1 = arith.constant 0 : i32
    return %c0_i32, %c0_i32_0 : i32, i32
  }
  func.func @transform_3(%arg0: i32) -> (i32, i32) {
    %c0_i32 = arith.constant 0 : i32
    %c0_i32_0 = arith.constant 0 : i32
    %c0_i32_1 = arith.constant 0 : i32
    return %c0_i32, %c0_i32_0 : i32, i32
  }
  func.func @transform_4(%arg0: i32) -> (i32, i32) {
    %c0_i32 = arith.constant 0 : i32
    %c0_i32_0 = arith.constant 0 : i32
    return %arg0, %c0_i32 : i32, i32
  }
  func.func @transform_5(%arg0: i32) -> (i32, i32, i32) {
    %c0_i32 = arith.constant 0 : i32
    %c0_i32_0 = arith.constant 0 : i32
    %c0_i32_1 = arith.constant 0 : i32
    return %arg0, %c0_i32, %c0_i32_0 : i32, i32, i32
  }
}

</mosaic_0001>

<llo_original>
// kernel: tpu_custom_call.1
$region0: #{tpu_custom_call.1}
  #allocation0 [shape = 'u32[]', space=smem, size = 0x4, offset = 0x4, fixed_abs, tag = 'smem constant byte address 0x4 - core index']
  #allocation1 [shape = 'u32[144,128]{1,0:T(1,128)}', space=vmem, size = 0x12000, scoped, tag = 'internal scratch']
  %s0 = inlined_call_operand.hbm [shape: f32[16,8,32], index: 0, kind: input, shape index: {}]
  %s1 = inlined_call_operand.vmem [shape: f32[32,4], index: 1, kind: input, shape index: {}]
  %s2 = inlined_call_operand.vmem [shape: f32[1,4], index: 2, kind: input, shape index: {}]
  %s3 = inlined_call_operand.vmem [shape: f32[4,32], index: 3, kind: input, shape index: {}]
  %s4 = inlined_call_operand.hbm [shape: f32[16,32], index: 4, kind: output, shape index: {0}]
  %s5 = inlined_call_operand.vmem [shape: f32[16,8,4], index: 5, kind: output, shape index: {1}]
  %6 = xla_tuple %s4, %s5
  %s7 = sld [smem:[#allocation0]]
  $region38: #{tpu_custom_call.1} parent=0
    _
  %s9 = ssub.s32 1, %s7
  %s10 = scalar_select 0, %s9, %s7
  $region1: #{tpu_custom_call.1} parent=0
    #allocation2 [shape = 'u8[65536]{0}', space=vmem, size = 0x10000, scoped, tag = 'input window, operand 0, single buffered']
    #allocation3 [shape = 's32[1]{0}', space=sflag, size = 0x4, scoped, tag = 'scoped memory for tpu_custom_call.1']
    #allocation4 [shape = 's32[1]{0}', space=sflag, size = 0x4, scoped, tag = 'scoped memory for tpu_custom_call.1']
    #allocation5 [shape = 'u8[8192]{0}', space=vmem, size = 0x2000, scoped, tag = 'output window, operand 0, single buffered']
    %11 = vsyncpa [#allocation3], 0
    %12 = vsyncpa [#allocation4], 0
    // Predicated region
    $region2: #{tpu_custom_call.1} parent=1 // pred_check
      _
    $region3: #{tpu_custom_call.1} parent=1 // pred_check_branch
      %14 = sbr.rel (0) target = $region5
    $region4: #{tpu_custom_call.1} parent=1 // pred_region
      %s16 = ssub.s32 2048, 2048
      %17 = vsyncadd [#allocation3], %s16
      %s18 = sshll.u32 [#allocation2], 4
      %s19 = int_to_ptr.vmem [resolvable:$true] %s18
      %24 = dma.hbm_to_vmem [thread:$0]  %s0, 2048, %s19, [#allocation3], 128, 128, 8
    $region5: #{tpu_custom_call.1} parent=1 // pred_fallthru
      _
    // Predicated region
    $region6: #{tpu_custom_call.1} parent=1 // pred_check
      _
    $region7: #{tpu_custom_call.1} parent=1 // pred_check_branch
      %26 = sbr.rel (0) target = $region9
    $region8: #{tpu_custom_call.1} parent=1 // pred_region
      _
    $region9: #{tpu_custom_call.1} parent=1 // pred_fallthru
      _
    // Predicated region
    $region10: #{tpu_custom_call.1} parent=1 // pred_check
      _
    $region11: #{tpu_custom_call.1} parent=1 // pred_check_branch
      %28 = sbr.rel (0) target = $region13
    $region12: #{tpu_custom_call.1} parent=1 // pred_region
      _
    $region13: #{tpu_custom_call.1} parent=1 // pred_fallthru
      _
    // Predicated region
    $region14: #{tpu_custom_call.1} parent=1 // pred_check
      _
    $region15: #{tpu_custom_call.1} parent=1 // pred_check_branch
      %30 = sbr.rel (0) target = $region17
    $region16: #{tpu_custom_call.1} parent=1 // pred_region
      _
    $region17: #{tpu_custom_call.1} parent=1 // pred_fallthru
      _
    // Predicated region
    $region18: #{tpu_custom_call.1} parent=1 // pred_check
      _
    $region19: #{tpu_custom_call.1} parent=1 // pred_check_branch
      %32 = sbr.rel (0) target = $region21
    $region20: #{tpu_custom_call.1} parent=1 // pred_region
      %33 = dma.done [#allocation3], 2048
    $region21: #{tpu_custom_call.1} parent=1 // pred_fallthru
      _
    %v34 = vld [vmem:[#allocation2] sm:$0xff]
    %v35 = vld [vmem:[#allocation2 + $0x8] sm:$0xff]
    %v36 = vld [vmem:[#allocation2 + $0x10] sm:$0xff]
    %v37 = vld [vmem:[#allocation2 + $0x18] sm:$0xff]
    %v38 = vld [vmem:[#allocation2 + $0x20] sm:$0xff]
    %v39 = vld [vmem:[#allocation2 + $0x28] sm:$0xff]
    %v40 = vld [vmem:[#allocation2 + $0x30] sm:$0xff]
    %v41 = vld [vmem:[#allocation2 + $0x38] sm:$0xff]
    %v42 = vld [vmem:[#allocation2 + $0x40] sm:$0xff]
    %v43 = vld [vmem:[#allocation2 + $0x48] sm:$0xff]
    %v44 = vld [vmem:[#allocation2 + $0x50] sm:$0xff]
    %v45 = vld [vmem:[#allocation2 + $0x58] sm:$0xff]
    %v46 = vld [vmem:[#allocation2 + $0x60] sm:$0xff]
    %v47 = vld [vmem:[#allocation2 + $0x68] sm:$0xff]
    %v48 = vld [vmem:[#allocation2 + $0x70] sm:$0xff]
    %v49 = vld [vmem:[#allocation2 + $0x78] sm:$0xff]
    %v50 = vld [vmem:[%s1] sm:$0xff]
    %v51 = vld [vmem:[%s1 + $0x8] sm:$0xff]
    %v52 = vld [vmem:[%s1 + $0x10] sm:$0xff]
    %v53 = vld [vmem:[%s1 + $0x18] sm:$0xff]
    %v54 = vld [vmem:[%s2] sm:$0x1]
    %v56 = vlaneseq
    %v57 = vshrl.u32 %v56, 7
    %v58 = vsub.s32 0, %v57
    %v59 = vrot.slane %v54, %v58
    %vm61 = vcmask 261120
    %v63 = vsel %vm61, %v34, 0
    %v66 = vsel %vm61, %v35, 0
    %v69 = vsel %vm61, %v36, 0
    %v72 = vsel %vm61, %v37, 0
    %v75 = vsel %vm61, %v38, 0
    %v78 = vsel %vm61, %v39, 0
    %v81 = vsel %vm61, %v40, 0
    %v84 = vsel %vm61, %v41, 0
    %v87 = vsel %vm61, %v42, 0
    %v90 = vsel %vm61, %v43, 0
    %v93 = vsel %vm61, %v44, 0
    %v96 = vsel %vm61, %v45, 0
    %v99 = vsel %vm61, %v46, 0
    %v102 = vsel %vm61, %v47, 0
    %v105 = vsel %vm61, %v48, 0
    %v108 = vsel %vm61, %v49, 0
    %110 = vmatprep.subr.mxu0 0.0
    %111 = vmatpush1.msra.mxu0 %v50
    %112 = vmatprep.subr.mxu0 0.0
    %113 = vmatpush1.msra.mxu0 %v51
    %114 = vmatprep.subr.mxu0 0.0
    %115 = vmatpush1.msra.mxu0 %v52
    %116 = vmatprep.subr.mxu0 0.0
    %117 = vmatpush1.msra.mxu0 %v53
    %118 = vmatprep.subr.mxu0 0.0
    %119 = vmatpush1.msra.mxu0 0.0
    %120 = vmatprep.subr.mxu0 0.0
    %121 = vmatpush1.msra.mxu0 0.0
    %122 = vmatprep.subr.mxu0 0.0
    %123 = vmatpush1.msra.mxu0 0.0
    %124 = vmatprep.subr.mxu0 0.0
    %125 = vmatpush1.msra.mxu0 0.0
    %126 = vmatprep.subr.mxu0 0.0
    %127 = vmatpush1.msra.mxu0 0.0
    %128 = vmatprep.subr.mxu0 0.0
    %129 = vmatpush1.msra.mxu0 0.0
    %130 = vmatprep.subr.mxu0 0.0
    %131 = vmatpush1.msra.mxu0 0.0
    %132 = vmatprep.subr.mxu0 0.0
    %133 = vmatpush1.msra.mxu0 0.0
    %134 = vmatprep.subr.mxu0 0.0
    %135 = vmatpush1.msra.mxu0 0.0
    %136 = vmatprep.subr.mxu0 0.0
    %137 = vmatpush1.msra.mxu0 0.0
    %138 = vmatprep.subr.mxu0 0.0
    %139 = vmatpush1.msra.mxu0 0.0
    %140 = vmatprep.subr.mxu0 0.0
    %141 = vmatpush1.msra.mxu0 0.0
    %142 = vmatprep.subr.mxu0 0.0
    %143 = vmatpush1.msra.mxu0 0.0
    %144 = vmatprep.subr.mxu0 0.0
    %145 = vmatpush1.msra.mxu0 0.0
    %146 = vmatprep.subr.mxu0 0.0
    %147 = vmatpush1.msra.mxu0 0.0
    %148 = vmatprep.subr.mxu0 0.0
    %149 = vmatpush1.msra.mxu0 0.0
    %150 = vmatprep.subr.mxu0 0.0
    %151 = vmatpush1.msra.mxu0 0.0
    %152 = vmatprep.subr.mxu0 0.0
    %153 = vmatpush1.msra.mxu0 0.0
    %154 = vmatprep.subr.mxu0 0.0
    %155 = vmatpush1.msra.mxu0 0.0
    %156 = vmatprep.subr.mxu0 0.0
    %157 = vmatpush1.msra.mxu0 0.0
    %158 = vmatprep.subr.mxu0 0.0
    %159 = vmatpush1.msra.mxu0 0.0
    %160 = vmatprep.subr.mxu0 0.0
    %161 = vmatpush1.msra.mxu0 0.0
    %162 = vmatprep.subr.mxu0 0.0
    %163 = vmatpush1.msra.mxu0 0.0
    %164 = vmatprep.subr.mxu0 0.0
    %165 = vmatpush1.msra.mxu0 0.0
    %166 = vmatprep.subr.mxu0 0.0
    %167 = vmatpush1.msra.mxu0 0.0
    %168 = vmatprep.subr.mxu0 0.0
    %169 = vmatpush1.msra.mxu0 0.0
    %170 = vmatprep.subr.mxu0 0.0
    %171 = vmatpush1.msra.mxu0 0.0
    %172 = vmatprep.subr.mxu0 0.0
    %173 = vmatpush1.msra.mxu0 0.0
    %174 = vmatprep.mubr.f32.mxu0 0.0
    %175 = vmatmul.mubr.f32.gmra.mrb[0].mxu0 %v63
    %v176 = vpop.f32.mrb[0].mxu0
    %v177 = vadd.f32 %v59, %v176
    %v178 = vpop.f32.mrb[0].mxu0
    %179 = vmatprep.mubr.f32.mxu0 0.0
    %180 = vmatmul.mubr.f32.gmra.mrb[0].mxu0 %v66
    %v181 = vpop.f32.mrb[0].mxu0
    %v182 = vadd.f32 %v59, %v181
    %v183 = vpop.f32.mrb[0].mxu0
    %184 = vmatprep.mubr.f32.mxu0 0.0
    %185 = vmatmul.mubr.f32.gmra.mrb[0].mxu0 %v69
    %v186 = vpop.f32.mrb[0].mxu0
    %v187 = vadd.f32 %v59, %v186
    %v188 = vpop.f32.mrb[0].mxu0
    %189 = vmatprep.mubr.f32.mxu0 0.0
    %190 = vmatmul.mubr.f32.gmra.mrb[0].mxu0 %v72
    %v191 = vpop.f32.mrb[0].mxu0
    %v192 = vadd.f32 %v59, %v191
    %v193 = vpop.f32.mrb[0].mxu0
    %194 = vmatprep.mubr.f32.mxu0 0.0
    %195 = vmatmul.mubr.f32.gmra.mrb[0].mxu0 %v75
    %v196 = vpop.f32.mrb[0].mxu0
    %v197 = vadd.f32 %v59, %v196
    %v198 = vpop.f32.mrb[0].mxu0
    %199 = vmatprep.mubr.f32.mxu0 0.0
    %200 = vmatmul.mubr.f32.gmra.mrb[0].mxu0 %v78
    %v201 = vpop.f32.mrb[0].mxu0
    %v202 = vadd.f32 %v59, %v201
    %v203 = vpop.f32.mrb[0].mxu0
    %204 = vmatprep.mubr.f32.mxu0 0.0
    %205 = vmatmul.mubr.f32.gmra.mrb[0].mxu0 %v81
    %v206 = vpop.f32.mrb[0].mxu0
    %v207 = vadd.f32 %v59, %v206
    %v208 = vpop.f32.mrb[0].mxu0
    %209 = vmatprep.mubr.f32.mxu0 0.0
    %210 = vmatmul.mubr.f32.gmra.mrb[0].mxu0 %v84
    %v211 = vpop.f32.mrb[0].mxu0
    %v212 = vadd.f32 %v59, %v211
    %v213 = vpop.f32.mrb[0].mxu0
    %214 = vmatprep.mubr.f32.mxu0 0.0
    %215 = vmatmul.mubr.f32.gmra.mrb[0].mxu0 %v87
    %v216 = vpop.f32.mrb[0].mxu0
    %v217 = vadd.f32 %v59, %v216
    %v218 = vpop.f32.mrb[0].mxu0
    %219 = vmatprep.mubr.f32.mxu0 0.0
    %220 = vmatmul.mubr.f32.gmra.mrb[0].mxu0 %v90
    %v221 = vpop.f32.mrb[0].mxu0
    %v222 = vadd.f32 %v59, %v221
    %v223 = vpop.f32.mrb[0].mxu0
    %224 = vmatprep.mubr.f32.mxu0 0.0
    %225 = vmatmul.mubr.f32.gmra.mrb[0].mxu0 %v93
    %v226 = vpop.f32.mrb[0].mxu0
    %v227 = vadd.f32 %v59, %v226
    %v228 = vpop.f32.mrb[0].mxu0
    %229 = vmatprep.mubr.f32.mxu0 0.0
    %230 = vmatmul.mubr.f32.gmra.mrb[0].mxu0 %v96
    %v231 = vpop.f32.mrb[0].mxu0
    %v232 = vadd.f32 %v59, %v231
    %v233 = vpop.f32.mrb[0].mxu0
    %234 = vmatprep.mubr.f32.mxu0 0.0
    %235 = vmatmul.mubr.f32.gmra.mrb[0].mxu0 %v99
    %v236 = vpop.f32.mrb[0].mxu0
    %v237 = vadd.f32 %v59, %v236
    %v238 = vpop.f32.mrb[0].mxu0
    %239 = vmatprep.mubr.f32.mxu0 0.0
    %240 = vmatmul.mubr.f32.gmra.mrb[0].mxu0 %v102
    %v241 = vpop.f32.mrb[0].mxu0
    %v242 = vadd.f32 %v59, %v241
    %v243 = vpop.f32.mrb[0].mxu0
    %244 = vmatprep.mubr.f32.mxu0 0.0
    %245 = vmatmul.mubr.f32.gmra.mrb[0].mxu0 %v105
    %v246 = vpop.f32.mrb[0].mxu0
    %v247 = vadd.f32 %v59, %v246
    %v248 = vpop.f32.mrb[0].mxu0
    %249 = vmatprep.mubr.f32.mxu0 0.0
    %250 = vmatmul.mubr.f32.gmra.mrb[0].mxu0 %v108
    %v251 = vpop.f32.mrb[0].mxu0
    %v252 = vadd.f32 %v59, %v251
    %v253 = vpop.f32.mrb[0].mxu0
    %254 = vdwg.mxu0
    %vm255 = vcmask 31744
    %v256 = vsel %vm255, %v177, -inf
    %v257 = vrot.slane %v256, 4
    %v258 = vmax.f32 %v256, %v257
    %v259 = vrot.slane %v258, 2
    %v260 = vmax.f32 %v258, %v259
    %v261 = vrot.slane %v260, 1
    %v262 = vmax.f32 %v260, %v261
    %v263 = vsel %vm255, %v182, -inf
    %v264 = vrot.slane %v263, 4
    %v265 = vmax.f32 %v263, %v264
    %v266 = vrot.slane %v265, 2
    %v267 = vmax.f32 %v265, %v266
    %v268 = vrot.slane %v267, 1
    %v269 = vmax.f32 %v267, %v268
    %v270 = vsel %vm255, %v187, -inf
    %v271 = vrot.slane %v270, 4
    %v272 = vmax.f32 %v270, %v271
    %v273 = vrot.slane %v272, 2
    %v274 = vmax.f32 %v272, %v273
    %v275 = vrot.slane %v274, 1
    %v276 = vmax.f32 %v274, %v275
    %v277 = vsel %vm255, %v192, -inf
    %v278 = vrot.slane %v277, 4
    %v279 = vmax.f32 %v277, %v278
    %v280 = vrot.slane %v279, 2
    %v281 = vmax.f32 %v279, %v280
    %v282 = vrot.slane %v281, 1
    %v283 = vmax.f32 %v281, %v282
    %v284 = vsel %vm255, %v197, -inf
    %v285 = vrot.slane %v284, 4
    %v286 = vmax.f32 %v284, %v285
    %v287 = vrot.slane %v286, 2
    %v288 = vmax.f32 %v286, %v287
    %v289 = vrot.slane %v288, 1
    %v290 = vmax.f32 %v288, %v289
    %v291 = vsel %vm255, %v202, -inf
    %v292 = vrot.slane %v291, 4
    %v293 = vmax.f32 %v291, %v292
    %v294 = vrot.slane %v293, 2
    %v295 = vmax.f32 %v293, %v294
    %v296 = vrot.slane %v295, 1
    %v297 = vmax.f32 %v295, %v296
    %v298 = vsel %vm255, %v207, -inf
    %v299 = vrot.slane %v298, 4
    %v300 = vmax.f32 %v298, %v299
    %v301 = vrot.slane %v300, 2
    %v302 = vmax.f32 %v300, %v301
    %v303 = vrot.slane %v302, 1
    %v304 = vmax.f32 %v302, %v303
    %v305 = vsel %vm255, %v212, -inf
    %v306 = vrot.slane %v305, 4
    %v307 = vmax.f32 %v305, %v306
    %v308 = vrot.slane %v307, 2
    %v309 = vmax.f32 %v307, %v308
    %v310 = vrot.slane %v309, 1
    %v311 = vmax.f32 %v309, %v310
    %v312 = vsel %vm255, %v217, -inf
    %v313 = vrot.slane %v312, 4
    %v314 = vmax.f32 %v312, %v313
    %v315 = vrot.slane %v314, 2
    %v316 = vmax.f32 %v314, %v315
    %v317 = vrot.slane %v316, 1
    %v318 = vmax.f32 %v316, %v317
    %v319 = vsel %vm255, %v222, -inf
    %v320 = vrot.slane %v319, 4
    %v321 = vmax.f32 %v319, %v320
    %v322 = vrot.slane %v321, 2
    %v323 = vmax.f32 %v321, %v322
    %v324 = vrot.slane %v323, 1
    %v325 = vmax.f32 %v323, %v324
    %v326 = vsel %vm255, %v227, -inf
    %v327 = vrot.slane %v326, 4
    %v328 = vmax.f32 %v326, %v327
    %v329 = vrot.slane %v328, 2
    %v330 = vmax.f32 %v328, %v329
    %v331 = vrot.slane %v330, 1
    %v332 = vmax.f32 %v330, %v331
    %v333 = vsel %vm255, %v232, -inf
    %v334 = vrot.slane %v333, 4
    %v335 = vmax.f32 %v333, %v334
    %v336 = vrot.slane %v335, 2
    %v337 = vmax.f32 %v335, %v336
    %v338 = vrot.slane %v337, 1
    %v339 = vmax.f32 %v337, %v338
    %v340 = vsel %vm255, %v237, -inf
    %v341 = vrot.slane %v340, 4
    %v342 = vmax.f32 %v340, %v341
    %v343 = vrot.slane %v342, 2
    %v344 = vmax.f32 %v342, %v343
    %v345 = vrot.slane %v344, 1
    %v346 = vmax.f32 %v344, %v345
    %v347 = vsel %vm255, %v242, -inf
    %v348 = vrot.slane %v347, 4
    %v349 = vmax.f32 %v347, %v348
    %v350 = vrot.slane %v349, 2
    %v351 = vmax.f32 %v349, %v350
    %v352 = vrot.slane %v351, 1
    %v353 = vmax.f32 %v351, %v352
    %v354 = vsel %vm255, %v247, -inf
    %v355 = vrot.slane %v354, 4
    %v356 = vmax.f32 %v354, %v355
    %v357 = vrot.slane %v356, 2
    %v358 = vmax.f32 %v356, %v357
    %v359 = vrot.slane %v358, 1
    %v360 = vmax.f32 %v358, %v359
    %v361 = vsel %vm255, %v252, -inf
    %v362 = vrot.slane %v361, 4
    %v363 = vmax.f32 %v361, %v362
    %v364 = vrot.slane %v363, 2
    %v365 = vmax.f32 %v363, %v364
    %v366 = vrot.slane %v365, 1
    %v367 = vmax.f32 %v365, %v366
    %v368 = vsub.f32 %v177, %v262
    %v369 = vsub.f32 %v182, %v269
    %v370 = vsub.f32 %v187, %v276
    %v371 = vsub.f32 %v192, %v283
    %v372 = vsub.f32 %v197, %v290
    %v373 = vsub.f32 %v202, %v297
    %v374 = vsub.f32 %v207, %v304
    %v375 = vsub.f32 %v212, %v311
    %v376 = vsub.f32 %v217, %v318
    %v377 = vsub.f32 %v222, %v325
    %v378 = vsub.f32 %v227, %v332
    %v379 = vsub.f32 %v232, %v339
    %v380 = vsub.f32 %v237, %v346
    %v381 = vsub.f32 %v242, %v353
    %v382 = vsub.f32 %v247, %v360
    %v383 = vsub.f32 %v252, %v367
    %v384 = vmul.f32 %v368, 1.442695
    %v385 = vpow.pop %v384
    %v386 = vmul.f32 %v369, 1.442695
    %v387 = vpow.pop %v386
    %v388 = vmul.f32 %v370, 1.442695
    %v389 = vpow.pop %v388
    %v390 = vmul.f32 %v371, 1.442695
    %v391 = vpow.pop %v390
    %v392 = vmul.f32 %v372, 1.442695
    %v393 = vpow.pop %v392
    %v394 = vmul.f32 %v373, 1.442695
    %v395 = vpow.pop %v394
    %v396 = vmul.f32 %v374, 1.442695
    %v397 = vpow.pop %v396
    %v398 = vmul.f32 %v375, 1.442695
    %v399 = vpow.pop %v398
    %v400 = vmul.f32 %v376, 1.442695
    %v401 = vpow.pop %v400
    %v402 = vmul.f32 %v377, 1.442695
    %v403 = vpow.pop %v402
    %v404 = vmul.f32 %v378, 1.442695
    %v405 = vpow.pop %v404
    %v406 = vmul.f32 %v379, 1.442695
    %v407 = vpow.pop %v406
    %v408 = vmul.f32 %v380, 1.442695
    %v409 = vpow.pop %v408
    %v410 = vmul.f32 %v381, 1.442695
    %v411 = vpow.pop %v410
    %v412 = vmul.f32 %v382, 1.442695
    %v413 = vpow.pop %v412
    %v414 = vmul.f32 %v383, 1.442695
    %v415 = vpow.pop %v414
    %v416 = vsel %vm255, %v385, 0.0
    %v417 = vrot.slane %v416, 4
    %v418 = vadd.f32 %v416, %v417
    %v419 = vrot.slane %v418, 2
    %v420 = vadd.f32 %v418, %v419
    %v421 = vrot.slane %v420, 1
    %v422 = vadd.f32 %v420, %v421
    %v423 = vsel %vm255, %v387, 0.0
    %v424 = vrot.slane %v423, 4
    %v425 = vadd.f32 %v423, %v424
    %v426 = vrot.slane %v425, 2
    %v427 = vadd.f32 %v425, %v426
    %v428 = vrot.slane %v427, 1
    %v429 = vadd.f32 %v427, %v428
    %v430 = vsel %vm255, %v389, 0.0
    %v431 = vrot.slane %v430, 4
    %v432 = vadd.f32 %v430, %v431
    %v433 = vrot.slane %v432, 2
    %v434 = vadd.f32 %v432, %v433
    %v435 = vrot.slane %v434, 1
    %v436 = vadd.f32 %v434, %v435
    %v437 = vsel %vm255, %v391, 0.0
    %v438 = vrot.slane %v437, 4
    %v439 = vadd.f32 %v437, %v438
    %v440 = vrot.slane %v439, 2
    %v441 = vadd.f32 %v439, %v440
    %v442 = vrot.slane %v441, 1
    %v443 = vadd.f32 %v441, %v442
    %v444 = vsel %vm255, %v393, 0.0
    %v445 = vrot.slane %v444, 4
    %v446 = vadd.f32 %v444, %v445
    %v447 = vrot.slane %v446, 2
    %v448 = vadd.f32 %v446, %v447
    %v449 = vrot.slane %v448, 1
    %v450 = vadd.f32 %v448, %v449
    %v451 = vsel %vm255, %v395, 0.0
    %v452 = vrot.slane %v451, 4
    %v453 = vadd.f32 %v451, %v452
    %v454 = vrot.slane %v453, 2
    %v455 = vadd.f32 %v453, %v454
    %v456 = vrot.slane %v455, 1
    %v457 = vadd.f32 %v455, %v456
    %v458 = vsel %vm255, %v397, 0.0
    %v459 = vrot.slane %v458, 4
    %v460 = vadd.f32 %v458, %v459
    %v461 = vrot.slane %v460, 2
    %v462 = vadd.f32 %v460, %v461
    %v463 = vrot.slane %v462, 1
    %v464 = vadd.f32 %v462, %v463
    %v465 = vsel %vm255, %v399, 0.0
    %v466 = vrot.slane %v465, 4
    %v467 = vadd.f32 %v465, %v466
    %v468 = vrot.slane %v467, 2
    %v469 = vadd.f32 %v467, %v468
    %v470 = vrot.slane %v469, 1
    %v471 = vadd.f32 %v469, %v470
    %v472 = vsel %vm255, %v401, 0.0
    %v473 = vrot.slane %v472, 4
    %v474 = vadd.f32 %v472, %v473
    %v475 = vrot.slane %v474, 2
    %v476 = vadd.f32 %v474, %v475
    %v477 = vrot.slane %v476, 1
    %v478 = vadd.f32 %v476, %v477
    %v479 = vsel %vm255, %v403, 0.0
    %v480 = vrot.slane %v479, 4
    %v481 = vadd.f32 %v479, %v480
    %v482 = vrot.slane %v481, 2
    %v483 = vadd.f32 %v481, %v482
    %v484 = vrot.slane %v483, 1
    %v485 = vadd.f32 %v483, %v484
    %v486 = vsel %vm255, %v405, 0.0
    %v487 = vrot.slane %v486, 4
    %v488 = vadd.f32 %v486, %v487
    %v489 = vrot.slane %v488, 2
    %v490 = vadd.f32 %v488, %v489
    %v491 = vrot.slane %v490, 1
    %v492 = vadd.f32 %v490, %v491
    %v493 = vsel %vm255, %v407, 0.0
    %v494 = vrot.slane %v493, 4
    %v495 = vadd.f32 %v493, %v494
    %v496 = vrot.slane %v495, 2
    %v497 = vadd.f32 %v495, %v496
    %v498 = vrot.slane %v497, 1
    %v499 = vadd.f32 %v497, %v498
    %v500 = vsel %vm255, %v409, 0.0
    %v501 = vrot.slane %v500, 4
    %v502 = vadd.f32 %v500, %v501
    %v503 = vrot.slane %v502, 2
    %v504 = vadd.f32 %v502, %v503
    %v505 = vrot.slane %v504, 1
    %v506 = vadd.f32 %v504, %v505
    %v507 = vsel %vm255, %v411, 0.0
    %v508 = vrot.slane %v507, 4
    %v509 = vadd.f32 %v507, %v508
    %v510 = vrot.slane %v509, 2
    %v511 = vadd.f32 %v509, %v510
    %v512 = vrot.slane %v511, 1
    %v513 = vadd.f32 %v511, %v512
    %v514 = vsel %vm255, %v413, 0.0
    %v515 = vrot.slane %v514, 4
    %v516 = vadd.f32 %v514, %v515
    %v517 = vrot.slane %v516, 2
    %v518 = vadd.f32 %v516, %v517
    %v519 = vrot.slane %v518, 1
    %v520 = vadd.f32 %v518, %v519
    %v521 = vsel %vm255, %v415, 0.0
    %v522 = vrot.slane %v521, 4
    %v523 = vadd.f32 %v521, %v522
    %v524 = vrot.slane %v523, 2
    %v525 = vadd.f32 %v523, %v524
    %v526 = vrot.slane %v525, 1
    %v527 = vadd.f32 %v525, %v526
    %v528 = vrcp.pop %v422
    %v529 = vmul.f32 %v385, %v528
    %v530 = vrcp.pop %v429
    %v531 = vmul.f32 %v387, %v530
    %v532 = vrcp.pop %v436
    %v533 = vmul.f32 %v389, %v532
    %v534 = vrcp.pop %v443
    %v535 = vmul.f32 %v391, %v534
    %v536 = vrcp.pop %v450
    %v537 = vmul.f32 %v393, %v536
    %v538 = vrcp.pop %v457
    %v539 = vmul.f32 %v395, %v538
    %v540 = vrcp.pop %v464
    %v541 = vmul.f32 %v397, %v540
    %v542 = vrcp.pop %v471
    %v543 = vmul.f32 %v399, %v542
    %v544 = vrcp.pop %v478
    %v545 = vmul.f32 %v401, %v544
    %v546 = vrcp.pop %v485
    %v547 = vmul.f32 %v403, %v546
    %v548 = vrcp.pop %v492
    %v549 = vmul.f32 %v405, %v548
    %v550 = vrcp.pop %v499
    %v551 = vmul.f32 %v407, %v550
    %v552 = vrcp.pop %v506
    %v553 = vmul.f32 %v409, %v552
    %v554 = vrcp.pop %v513
    %v555 = vmul.f32 %v411, %v554
    %v556 = vrcp.pop %v520
    %v557 = vmul.f32 %v413, %v556
    %v558 = vrcp.pop %v527
    %v559 = vmul.f32 %v415, %v558
    %560 = vst.msk [vmem:[%s5] sm:$0xff] %vm255, %v529
    %561 = vst.msk [vmem:[%s5 + $0x8] sm:$0xff] %vm255, %v531
    %562 = vst.msk [vmem:[%s5 + $0x10] sm:$0xff] %vm255, %v533
    %563 = vst.msk [vmem:[%s5 + $0x18] sm:$0xff] %vm255, %v535
    %564 = vst.msk [vmem:[%s5 + $0x20] sm:$0xff] %vm255, %v537
    %565 = vst.msk [vmem:[%s5 + $0x28] sm:$0xff] %vm255, %v539
    %566 = vst.msk [vmem:[%s5 + $0x30] sm:$0xff] %vm255, %v541
    %567 = vst.msk [vmem:[%s5 + $0x38] sm:$0xff] %vm255, %v543
    %568 = vst.msk [vmem:[%s5 + $0x40] sm:$0xff] %vm255, %v545
    %569 = vst.msk [vmem:[%s5 + $0x48] sm:$0xff] %vm255, %v547
    %570 = vst.msk [vmem:[%s5 + $0x50] sm:$0xff] %vm255, %v549
    %571 = vst.msk [vmem:[%s5 + $0x58] sm:$0xff] %vm255, %v551
    %572 = vst.msk [vmem:[%s5 + $0x60] sm:$0xff] %vm255, %v553
    %573 = vst.msk [vmem:[%s5 + $0x68] sm:$0xff] %vm255, %v555
    %574 = vst.msk [vmem:[%s5 + $0x70] sm:$0xff] %vm255, %v557
    %575 = vst.msk [vmem:[%s5 + $0x78] sm:$0xff] %vm255, %v559
    %v576 = vld [vmem:[%s3] sm:$0xf]
    %v578 = vsel %vm255, %v529, 0
    %v581 = vsel %vm255, %v531, 0
    %v584 = vsel %vm255, %v533, 0
    %v587 = vsel %vm255, %v535, 0
    %v590 = vsel %vm255, %v537, 0
    %v593 = vsel %vm255, %v539, 0
    %v596 = vsel %vm255, %v541, 0
    %v599 = vsel %vm255, %v543, 0
    %v602 = vsel %vm255, %v545, 0
    %v605 = vsel %vm255, %v547, 0
    %v608 = vsel %vm255, %v549, 0
    %v611 = vsel %vm255, %v551, 0
    %v614 = vsel %vm255, %v553, 0
    %v617 = vsel %vm255, %v555, 0
    %v620 = vsel %vm255, %v557, 0
    %v623 = vsel %vm255, %v559, 0
    %vm625 = vcmask 1043456
    %v627 = vsel %vm625, %v576, 0
    %629 = vmatprep.subr.mxu0 0.0
    %630 = vmatpush1.msra.mxu0 %v627
    %631 = vmatprep.subr.mxu0 0.0
    %632 = vmatpush1.msra.mxu0 0.0
    %633 = vmatprep.subr.mxu0 0.0
    %634 = vmatpush1.msra.mxu0 0.0
    %635 = vmatprep.subr.mxu0 0.0
    %636 = vmatpush1.msra.mxu0 0.0
    %637 = vmatprep.subr.mxu0 0.0
    %638 = vmatpush1.msra.mxu0 0.0
    %639 = vmatprep.subr.mxu0 0.0
    %640 = vmatpush1.msra.mxu0 0.0
    %641 = vmatprep.subr.mxu0 0.0
    %642 = vmatpush1.msra.mxu0 0.0
    %643 = vmatprep.subr.mxu0 0.0
    %644 = vmatpush1.msra.mxu0 0.0
    %645 = vmatprep.subr.mxu0 0.0
    %646 = vmatpush1.msra.mxu0 0.0
    %647 = vmatprep.subr.mxu0 0.0
    %648 = vmatpush1.msra.mxu0 0.0
    %649 = vmatprep.subr.mxu0 0.0
    %650 = vmatpush1.msra.mxu0 0.0
    %651 = vmatprep.subr.mxu0 0.0
    %652 = vmatpush1.msra.mxu0 0.0
    %653 = vmatprep.subr.mxu0 0.0
    %654 = vmatpush1.msra.mxu0 0.0
    %655 = vmatprep.subr.mxu0 0.0
    %656 = vmatpush1.msra.mxu0 0.0
    %657 = vmatprep.subr.mxu0 0.0
    %658 = vmatpush1.msra.mxu0 0.0
    %659 = vmatprep.subr.mxu0 0.0
    %660 = vmatpush1.msra.mxu0 0.0
    %661 = vmatprep.subr.mxu0 0.0
    %662 = vmatpush1.msra.mxu0 0.0
    %663 = vmatprep.subr.mxu0 0.0
    %664 = vmatpush1.msra.mxu0 0.0
    %665 = vmatprep.subr.mxu0 0.0
    %666 = vmatpush1.msra.mxu0 0.0
    %667 = vmatprep.subr.mxu0 0.0
    %668 = vmatpush1.msra.mxu0 0.0
    %669 = vmatprep.subr.mxu0 0.0
    %670 = vmatpush1.msra.mxu0 0.0
    %671 = vmatprep.subr.mxu0 0.0
    %672 = vmatpush1.msra.mxu0 0.0
    %673 = vmatprep.subr.mxu0 0.0
    %674 = vmatpush1.msra.mxu0 0.0
    %675 = vmatprep.subr.mxu0 0.0
    %676 = vmatpush1.msra.mxu0 0.0
    %677 = vmatprep.subr.mxu0 0.0
    %678 = vmatpush1.msra.mxu0 0.0
    %679 = vmatprep.subr.mxu0 0.0
    %680 = vmatpush1.msra.mxu0 0.0
    %681 = vmatprep.subr.mxu0 0.0
    %682 = vmatpush1.msra.mxu0 0.0
    %683 = vmatprep.subr.mxu0 0.0
    %684 = vmatpush1.msra.mxu0 0.0
    %685 = vmatprep.subr.mxu0 0.0
    %686 = vmatpush1.msra.mxu0 0.0
    %687 = vmatprep.subr.mxu0 0.0
    %688 = vmatpush1.msra.mxu0 0.0
    %689 = vmatprep.subr.mxu0 0.0
    %690 = vmatpush1.msra.mxu0 0.0
    %691 = vmatprep.subr.mxu0 0.0
    %692 = vmatpush1.msra.mxu0 0.0
    %693 = vmatprep.mubr.f32.mxu0 0.0
    %694 = vmatmul.mubr.f32.gmra.mrb[0].mxu0 %v578
    %v695 = vpop.f32.mrb[0].mxu0
    %v696 = vadd.f32 0.0, %v695
    %v697 = vpop.f32.mrb[0].mxu0
    %698 = vmatprep.mubr.f32.mxu0 0.0
    %699 = vmatmul.mubr.f32.gmra.mrb[0].mxu0 %v581
    %v700 = vpop.f32.mrb[0].mxu0
    %v701 = vadd.f32 0.0, %v700
    %v702 = vpop.f32.mrb[0].mxu0
    %703 = vmatprep.mubr.f32.mxu0 0.0
    %704 = vmatmul.mubr.f32.gmra.mrb[0].mxu0 %v584
    %v705 = vpop.f32.mrb[0].mxu0
    %v706 = vadd.f32 0.0, %v705
    %v707 = vpop.f32.mrb[0].mxu0
    %708 = vmatprep.mubr.f32.mxu0 0.0
    %709 = vmatmul.mubr.f32.gmra.mrb[0].mxu0 %v587
    %v710 = vpop.f32.mrb[0].mxu0
    %v711 = vadd.f32 0.0, %v710
    %v712 = vpop.f32.mrb[0].mxu0
    %713 = vmatprep.mubr.f32.mxu0 0.0
    %714 = vmatmul.mubr.f32.gmra.mrb[0].mxu0 %v590
    %v715 = vpop.f32.mrb[0].mxu0
    %v716 = vadd.f32 0.0, %v715
    %v717 = vpop.f32.mrb[0].mxu0
    %718 = vmatprep.mubr.f32.mxu0 0.0
    %719 = vmatmul.mubr.f32.gmra.mrb[0].mxu0 %v593
    %v720 = vpop.f32.mrb[0].mxu0
    %v721 = vadd.f32 0.0, %v720
    %v722 = vpop.f32.mrb[0].mxu0
    %723 = vmatprep.mubr.f32.mxu0 0.0
    %724 = vmatmul.mubr.f32.gmra.mrb[0].mxu0 %v596
    %v725 = vpop.f32.mrb[0].mxu0
    %v726 = vadd.f32 0.0, %v725
    %v727 = vpop.f32.mrb[0].mxu0
    %728 = vmatprep.mubr.f32.mxu0 0.0
    %729 = vmatmul.mubr.f32.gmra.mrb[0].mxu0 %v599
    %v730 = vpop.f32.mrb[0].mxu0
    %v731 = vadd.f32 0.0, %v730
    %v732 = vpop.f32.mrb[0].mxu0
    %733 = vmatprep.mubr.f32.mxu0 0.0
    %734 = vmatmul.mubr.f32.gmra.mrb[0].mxu0 %v602
    %v735 = vpop.f32.mrb[0].mxu0
    %v736 = vadd.f32 0.0, %v735
    %v737 = vpop.f32.mrb[0].mxu0
    %738 = vmatprep.mubr.f32.mxu0 0.0
    %739 = vmatmul.mubr.f32.gmra.mrb[0].mxu0 %v605
    %v740 = vpop.f32.mrb[0].mxu0
    %v741 = vadd.f32 0.0, %v740
    %v742 = vpop.f32.mrb[0].mxu0
    %743 = vmatprep.mubr.f32.mxu0 0.0
    %744 = vmatmul.mubr.f32.gmra.mrb[0].mxu0 %v608
    %v745 = vpop.f32.mrb[0].mxu0
    %v746 = vadd.f32 0.0, %v745
    %v747 = vpop.f32.mrb[0].mxu0
    %748 = vmatprep.mubr.f32.mxu0 0.0
    %749 = vmatmul.mubr.f32.gmra.mrb[0].mxu0 %v611
    %v750 = vpop.f32.mrb[0].mxu0
    %v751 = vadd.f32 0.0, %v750
    %v752 = vpop.f32.mrb[0].mxu0
    %753 = vmatprep.mubr.f32.mxu0 0.0
    %754 = vmatmul.mubr.f32.gmra.mrb[0].mxu0 %v614
    %v755 = vpop.f32.mrb[0].mxu0
    %v756 = vadd.f32 0.0, %v755
    %v757 = vpop.f32.mrb[0].mxu0
    %758 = vmatprep.mubr.f32.mxu0 0.0
    %759 = vmatmul.mubr.f32.gmra.mrb[0].mxu0 %v617
    %v760 = vpop.f32.mrb[0].mxu0
    %v761 = vadd.f32 0.0, %v760
    %v762 = vpop.f32.mrb[0].mxu0
    %763 = vmatprep.mubr.f32.mxu0 0.0
    %764 = vmatmul.mubr.f32.gmra.mrb[0].mxu0 %v620
    %v765 = vpop.f32.mrb[0].mxu0
    %v766 = vadd.f32 0.0, %v765
    %v767 = vpop.f32.mrb[0].mxu0
    %768 = vmatprep.mubr.f32.mxu0 0.0
    %769 = vmatmul.mubr.f32.gmra.mrb[0].mxu0 %v623
    %v770 = vpop.f32.mrb[0].mxu0
    %v771 = vadd.f32 0.0, %v770
    %v772 = vpop.f32.mrb[0].mxu0
    %773 = vdwg.mxu0
    %v774 = vmul.f32 %v696, %v34
    %v775 = vmul.f32 %v701, %v35
    %v776 = vmul.f32 %v706, %v36
    %v777 = vmul.f32 %v711, %v37
    %v778 = vmul.f32 %v716, %v38
    %v779 = vmul.f32 %v721, %v39
    %v780 = vmul.f32 %v726, %v40
    %v781 = vmul.f32 %v731, %v41
    %v782 = vmul.f32 %v736, %v42
    %v783 = vmul.f32 %v741, %v43
    %v784 = vmul.f32 %v746, %v44
    %v785 = vmul.f32 %v751, %v45
    %v786 = vmul.f32 %v756, %v46
    %v787 = vmul.f32 %v761, %v47
    %v788 = vmul.f32 %v766, %v48
    %v789 = vmul.f32 %v771, %v49
    %v790 = vsel %vm61, %v774, 0.0
    %v791 = vrot.slane %v790, 4
    %v792 = vadd.f32 %v790, %v791
    %v793 = vrot.slane %v792, 2
    %v794 = vadd.f32 %v792, %v793
    %v795 = vrot.slane %v794, 1
    %v796 = vadd.f32 %v794, %v795
    %v797 = vsel %vm61, %v775, 0.0
    %v798 = vrot.slane %v797, 4
    %v799 = vadd.f32 %v797, %v798
    %v800 = vrot.slane %v799, 2
    %v801 = vadd.f32 %v799, %v800
    %v802 = vrot.slane %v801, 1
    %v803 = vadd.f32 %v801, %v802
    %v804 = vsel %vm61, %v776, 0.0
    %v805 = vrot.slane %v804, 4
    %v806 = vadd.f32 %v804, %v805
    %v807 = vrot.slane %v806, 2
    %v808 = vadd.f32 %v806, %v807
    %v809 = vrot.slane %v808, 1
    %v810 = vadd.f32 %v808, %v809
    %v811 = vsel %vm61, %v777, 0.0
    %v812 = vrot.slane %v811, 4
    %v813 = vadd.f32 %v811, %v812
    %v814 = vrot.slane %v813, 2
    %v815 = vadd.f32 %v813, %v814
    %v816 = vrot.slane %v815, 1
    %v817 = vadd.f32 %v815, %v816
    %v818 = vsel %vm61, %v778, 0.0
    %v819 = vrot.slane %v818, 4
    %v820 = vadd.f32 %v818, %v819
    %v821 = vrot.slane %v820, 2
    %v822 = vadd.f32 %v820, %v821
    %v823 = vrot.slane %v822, 1
    %v824 = vadd.f32 %v822, %v823
    %v825 = vsel %vm61, %v779, 0.0
    %v826 = vrot.slane %v825, 4
    %v827 = vadd.f32 %v825, %v826
    %v828 = vrot.slane %v827, 2
    %v829 = vadd.f32 %v827, %v828
    %v830 = vrot.slane %v829, 1
    %v831 = vadd.f32 %v829, %v830
    %v832 = vsel %vm61, %v780, 0.0
    %v833 = vrot.slane %v832, 4
    %v834 = vadd.f32 %v832, %v833
    %v835 = vrot.slane %v834, 2
    %v836 = vadd.f32 %v834, %v835
    %v837 = vrot.slane %v836, 1
    %v838 = vadd.f32 %v836, %v837
    %v839 = vsel %vm61, %v781, 0.0
    %v840 = vrot.slane %v839, 4
    %v841 = vadd.f32 %v839, %v840
    %v842 = vrot.slane %v841, 2
    %v843 = vadd.f32 %v841, %v842
    %v844 = vrot.slane %v843, 1
    %v845 = vadd.f32 %v843, %v844
    %v846 = vsel %vm61, %v782, 0.0
    %v847 = vrot.slane %v846, 4
    %v848 = vadd.f32 %v846, %v847
    %v849 = vrot.slane %v848, 2
    %v850 = vadd.f32 %v848, %v849
    %v851 = vrot.slane %v850, 1
    %v852 = vadd.f32 %v850, %v851
    %v853 = vsel %vm61, %v783, 0.0
    %v854 = vrot.slane %v853, 4
    %v855 = vadd.f32 %v853, %v854
    %v856 = vrot.slane %v855, 2
    %v857 = vadd.f32 %v855, %v856
    %v858 = vrot.slane %v857, 1
    %v859 = vadd.f32 %v857, %v858
    %v860 = vsel %vm61, %v784, 0.0
    %v861 = vrot.slane %v860, 4
    %v862 = vadd.f32 %v860, %v861
    %v863 = vrot.slane %v862, 2
    %v864 = vadd.f32 %v862, %v863
    %v865 = vrot.slane %v864, 1
    %v866 = vadd.f32 %v864, %v865
    %v867 = vsel %vm61, %v785, 0.0
    %v868 = vrot.slane %v867, 4
    %v869 = vadd.f32 %v867, %v868
    %v870 = vrot.slane %v869, 2
    %v871 = vadd.f32 %v869, %v870
    %v872 = vrot.slane %v871, 1
    %v873 = vadd.f32 %v871, %v872
    %v874 = vsel %vm61, %v786, 0.0
    %v875 = vrot.slane %v874, 4
    %v876 = vadd.f32 %v874, %v875
    %v877 = vrot.slane %v876, 2
    %v878 = vadd.f32 %v876, %v877
    %v879 = vrot.slane %v878, 1
    %v880 = vadd.f32 %v878, %v879
    %v881 = vsel %vm61, %v787, 0.0
    %v882 = vrot.slane %v881, 4
    %v883 = vadd.f32 %v881, %v882
    %v884 = vrot.slane %v883, 2
    %v885 = vadd.f32 %v883, %v884
    %v886 = vrot.slane %v885, 1
    %v887 = vadd.f32 %v885, %v886
    %v888 = vsel %vm61, %v788, 0.0
    %v889 = vrot.slane %v888, 4
    %v890 = vadd.f32 %v888, %v889
    %v891 = vrot.slane %v890, 2
    %v892 = vadd.f32 %v890, %v891
    %v893 = vrot.slane %v892, 1
    %v894 = vadd.f32 %v892, %v893
    %v895 = vsel %vm61, %v789, 0.0
    %v896 = vrot.slane %v895, 4
    %v897 = vadd.f32 %v895, %v896
    %v898 = vrot.slane %v897, 2
    %v899 = vadd.f32 %v897, %v898
    %v900 = vrot.slane %v899, 1
    %v901 = vadd.f32 %v899, %v900
    %vm918 = vcmask 1041409
    %v919 = vsel %vm918, %v803, %v796
    %vm920 = vcmask 1042434
    %v921 = vsel %vm920, %v810, %v919
    %vm922 = vcmask 1043459
    %v923 = vsel %vm922, %v817, %v921
    %vm924 = vcmask 1044484
    %v925 = vsel %vm924, %v824, %v923
    %vm926 = vcmask 1045509
    %v927 = vsel %vm926, %v831, %v925
    %vm928 = vcmask 1046534
    %v929 = vsel %vm928, %v838, %v927
    %vm930 = vcmask 1047559
    %v931 = vsel %vm930, %v845, %v929
    %v932 = vsel %vm918, %v859, %v852
    %v933 = vsel %vm920, %v866, %v932
    %v934 = vsel %vm922, %v873, %v933
    %v935 = vsel %vm924, %v880, %v934
    %v936 = vsel %vm926, %v887, %v935
    %v937 = vsel %vm928, %v894, %v936
    %v938 = vsel %vm930, %v901, %v937
    %941 = vst.msk [vmem:[#allocation5] sm:$0xff] %vm61, %v931
    %942 = vst.msk [vmem:[#allocation5 + $0x8] sm:$0xff] %vm61, %v938
    // Predicated region
    $region22: #{tpu_custom_call.1} parent=1 // pred_check
      _
    $region23: #{tpu_custom_call.1} parent=1 // pred_check_branch
      %944 = sbr.rel (0) target = $region25
    $region24: #{tpu_custom_call.1} parent=1 // pred_region
      %s946 = ssub.s32 256, 256
      %947 = vsyncadd [#allocation4], %s946
      %s948 = sshll.u32 [#allocation5], 4
      %s949 = int_to_ptr.vmem [resolvable:$true] %s948
      %954 = dma.vmem_to_hbm [thread:$0]  %s949, 256, %s4, [#allocation4], 128, 128, 8
    $region25: #{tpu_custom_call.1} parent=1 // pred_fallthru
      _
    // Predicated region
    $region26: #{tpu_custom_call.1} parent=1 // pred_check
      _
    $region27: #{tpu_custom_call.1} parent=1 // pred_check_branch
      %956 = sbr.rel (0) target = $region29
    $region28: #{tpu_custom_call.1} parent=1 // pred_region
      _
    $region29: #{tpu_custom_call.1} parent=1 // pred_fallthru
      _
    // Predicated region
    $region30: #{tpu_custom_call.1} parent=1 // pred_check
      _
    $region31: #{tpu_custom_call.1} parent=1 // pred_check_branch
      %958 = sbr.rel (0) target = $region33
    $region32: #{tpu_custom_call.1} parent=1 // pred_region
      %959 = dma.done [#allocation4], 256
    $region33: #{tpu_custom_call.1} parent=1 // pred_fallthru
      _
    // Predicated region
    $region34: #{tpu_custom_call.1} parent=1 // pred_check
      _
    $region35: #{tpu_custom_call.1} parent=1 // pred_check_branch
      %961 = sbr.rel (0) target = $region37
    $region36: #{tpu_custom_call.1} parent=1 // pred_region
      _
    $region37: #{tpu_custom_call.1} parent=1 // pred_fallthru
      _
    %962 = vsyncpa [#allocation3], 1
    %963 = vsyncpa [#allocation4], 1

</llo_original>
